<compile_context>
chip_gen: v5e
topology: v5e:2x2
jax: 0.10.0
libtpu: 0.0.40
codegen_flags: <defaults>
</compile_context>

<pallas_src>
import math
from functools import partial

import jax
import jax.numpy as jnp
from jax.experimental import pallas as pl
from jax.experimental.pallas import tpu as pltpu


def _randproj_kernel(x_ref, wbd_ref, o_ref):
    # Hot path: matmul on the MXU, threshold + cast on the VPU.
    acc = jnp.dot(x_ref[...], wbd_ref[...], preferred_element_type=jnp.float32)
    o_ref[...] = (acc > 0).astype(jnp.float32)


def _round_up(x, m):
    return ((x + m - 1) // m) * m


@partial(jax.jit, static_argnames=("tile_rows", "min_rows_for_pallas"))
def rand_proj_forward(x, weight, *, tile_rows=2048, min_rows_for_pallas=1024):
    """x: (N, in_features) f32; weight: (hash_size, in_features) f32 (torch layout).

    Returns (N, hash_size) f32 of {0.0, 1.0}, matching (x @ W.T > 0).float().
    """
    n, in_f = x.shape
    hash_size = weight.shape[0]
    x = x.astype(jnp.float32)
    wt = weight.T.astype(jnp.float32)  # (in_features, hash_size)

    # Tiny problems: fixed pallas_call launch/DMA overhead dominates — let XLA
    # fuse the matmul + compare directly.
    if n < min_rows_for_pallas:
        return (x @ wt > 0).astype(jnp.float32)

    # ---- Lane folding: pack `fold` kmers per vreg row so loads/stores are
    # lane-dense (fold * in_features is a multiple of 128).
    fold = 128 // math.gcd(in_f, 128)
    if fold * in_f * fold * hash_size * 4 > (8 << 20):
        fold = 1  # block-diagonal weight would be too large; stay unfolded.
    folded_in = fold * in_f
    folded_out = fold * hash_size

    # Pad only to a multiple of `fold` (needed for the free row-major refold).
    # Common case N % fold == 0 -> no copy at all.
    padded_n = _round_up(n, fold)
    x_p = x if padded_n == n else jnp.pad(x, ((0, padded_n - n), (0, 0)))
    rows = padded_n // fold
    x_folded = x_p.reshape(rows, folded_in)  # free row-major view

    # Block-diagonal weight: fold copies of W.T on the diagonal. Off-block
    # zeros contribute exact 0.0 to each dot product, so results are unchanged.
    w_bd = jnp.kron(jnp.eye(fold, dtype=jnp.float32), wt)  # (folded_in, folded_out)

    # ---- Row tiling. Partial boundary tiles are clipped by Pallas, so no
    # padding / slicing to a tile multiple is needed.
    tile_rows = max(8, _round_up(tile_rows, 8))
    if rows <= tile_rows:
        tile_r = rows          # single block == full array dim (always legal)
    else:
        tile_r = tile_rows     # multiple of 8 (sublane rule)
    grid = (pl.cdiv(rows, tile_r),)

    cost = pl.CostEstimate(
        flops=2 * rows * folded_in * folded_out,
        transcendentals=0,
        bytes_accessed=4 * (rows * folded_in
                            + folded_in * folded_out
                            + rows * folded_out),
    )

    # Double-buffered input + output tiles + (resident) weight, with headroom.
    vmem_need = 4 * (2 * tile_r * (folded_in + folded_out)
                     + 2 * folded_in * folded_out)
    vmem_limit = min(max(vmem_need + (4 << 20), 16 << 20), 56 << 20)

    out_folded = pl.pallas_call(
        _randproj_kernel,
        out_shape=jax.ShapeDtypeStruct((rows, folded_out), jnp.float32),
        grid_spec=pltpu.PrefetchScalarGridSpec(
            num_scalar_prefetch=0,
            grid=grid,
            in_specs=[
                pl.BlockSpec((tile_r, folded_in), lambda i: (i, 0)),
                pl.BlockSpec((folded_in, folded_out), lambda i: (0, 0)),
            ],
            out_specs=pl.BlockSpec((tile_r, folded_out), lambda i: (i, 0)),
        ),
        compiler_params=pltpu.CompilerParams(
            dimension_semantics=("parallel",),  # row axis → both TCs on v7x
            vmem_limit_bytes=vmem_limit,
        ),
        cost_estimate=cost,
    )(x_folded, w_bd)

    # (rows, fold*hash) row-major is byte-identical to (padded_n, hash).
    out = out_folded.reshape(padded_n, hash_size)
    if padded_n != n:
        out = out[:n]
    return out


if __name__ == "__main__":
    # Shapes implied by the module: kmer_size=8 -> in_features=16, hash_size=32.
    kmer_size = 8
    hash_size = 32
    in_features = kmer_size * 2

    key = jax.random.PRNGKey(0)
    k_w, k_x1, k_x2, k_x3 = jax.random.split(key, 4)

    # Deterministic parameter init, matching torch.nn.init.normal_ (std normal).
    weight = jax.random.normal(k_w, (hash_size, in_features), dtype=jnp.float32)

    def ref(x):
        return (x @ weight.T > 0).astype(jnp.float32)

    def check(out, x):
        pre = x @ weight.T
        r = ref(x)
        assert out.shape == r.shape
        # Exact match except (astronomically unlikely) pre-activations at ~0
        # where MXU summation-order ulps could differ from the XLA reference.
        assert bool(jnp.all((out == r) | (jnp.abs(pre) < 1e-3)))

    # Case 1: moderate ragged batch -> tiled Pallas path with a partial
    # boundary tile (4000 kmers -> 500 folded rows -> grid of 4, last tile 116).
    n_big = 4000
    x_big = jnp.sign(jax.random.normal(k_x1, (n_big, in_features), jnp.float32))
    out_big = jax.block_until_ready(rand_proj_forward(x_big, weight, tile_rows=128))
    check(out_big, x_big)

    # Case 2: N not divisible by the fold factor -> exercises the small
    # pad-to-fold path with a single-block grid.
    n_odd = 1037
    x_odd = jax.random.normal(k_x2, (n_odd, in_features), jnp.float32)
    out_odd = jax.block_until_ready(rand_proj_forward(x_odd, weight))
    check(out_odd, x_odd)

    # Case 3: tiny batch (8 kmers, as in hash_read_batch) -> XLA fallback.
    n_small = 8
    x_small = jnp.sign(jax.random.normal(k_x3, (n_small, in_features), jnp.float32))
    out_small = jax.block_until_ready(rand_proj_forward(x_small, weight))
    assert out_small.shape == (n_small, hash_size)
    assert bool(jnp.all(out_small == ref(x_small)))

    print("KERNEL_OK")
</pallas_src>

<mosaic_0001>
module attributes {stable_mosaic.version = 11 : i64} {
  func.func @_randproj_kernel(%arg0: i32, %arg1: memref<128x128xf32, #tpu.memory_space<vmem>>, %arg2: memref<128x256xf32, #tpu.memory_space<vmem>>, %arg3: memref<128x256xf32, #tpu.memory_space<vmem>>) attributes {dimension_semantics = [#tpu.dimension_semantics<parallel>], iteration_bounds = array<i64: 4>, scalar_prefetch = 0 : i64, scratch_operands = 0 : i64, tpu.core_type = #tpu.core_type<tc>, window_params = [{transform_indices = @transform_0, window_bounds = array<i64: 128, 128>}, {pipeline_mode = #tpu.pipeline_mode<synchronous>, transform_indices = @transform_1, window_bounds = array<i64: 128, 256>}, {transform_indices = @transform_2, window_bounds = array<i64: 128, 256>}]} {
    %c0 = arith.constant 0 : index
    %c0_0 = arith.constant 0 : index
    %0 = vector.load %arg1[%c0, %c0_0] : memref<128x128xf32, #tpu.memory_space<vmem>>, vector<128x128xf32>
    %c0_1 = arith.constant 0 : index
    %c0_2 = arith.constant 0 : index
    %1 = vector.load %arg2[%c0_1, %c0_2] : memref<128x256xf32, #tpu.memory_space<vmem>>, vector<128x256xf32>
    %cst = arith.constant dense<0.000000e+00> : vector<128x256xf32>
    %2 = tpu.matmul %0, %1, %cst {dimension_numbers = #tpu.dot_dimension_numbers<[1], [0], [0], [1], [0, 0, 1, 1], [], []>} : vector<128x128xf32>, vector<128x256xf32>, vector<128x256xf32> -> vector<128x256xf32>
    %cst_3 = arith.constant 0.000000e+00 : f32
    %3 = vector.broadcast %cst_3 : f32 to vector<128x256xf32>
    %4 = arith.cmpf ogt, %2, %3 : vector<128x256xf32>
    %5 = arith.extui %4 : vector<128x256xi1> to vector<128x256xi32>
    %6 = arith.sitofp %5 : vector<128x256xi32> to vector<128x256xf32>
    %c0_4 = arith.constant 0 : index
    %c0_5 = arith.constant 0 : index
    %7 = vector.load %arg3[%c0_4, %c0_5] : memref<128x256xf32, #tpu.memory_space<vmem>>, vector<128x256xf32>
    tpu.vector_store %arg3[%c0_4, %c0_5], %6 {strides = array<i32>} : memref<128x256xf32, #tpu.memory_space<vmem>>, vector<128x256xf32>,
    return
  }
  func.func @transform_0(%arg0: i32) -> (i32, i32) {
    %c0_i32 = arith.constant 0 : i32
    %c0_i32_0 = arith.constant 0 : i32
    return %arg0, %c0_i32 : i32, i32
  }
  func.func @transform_1(%arg0: i32) -> (i32, i32) {
    %c0_i32 = arith.constant 0 : i32
    %c0_i32_0 = arith.constant 0 : i32
    %c0_i32_1 = arith.constant 0 : i32
    return %c0_i32, %c0_i32_0 : i32, i32
  }
  func.func @transform_2(%arg0: i32) -> (i32, i32) {
    %c0_i32 = arith.constant 0 : i32
    %c0_i32_0 = arith.constant 0 : i32
    return %arg0, %c0_i32 : i32, i32
  }
}

</mosaic_0001>

<llo_original>
// kernel: rand_proj_forward.1
$region0: #{rand_proj_forward.1}
  #allocation0 [shape = 'u32[]', space=smem, size = 0x4, offset = 0x4, fixed_abs, tag = 'smem constant byte address 0x4 - core index']
  #allocation1 [shape = 'u32[72,128]{1,0:T(1,128)}', space=vmem, size = 0x9000, scoped, tag = 'internal scratch']
  %s0 = inlined_call_operand.vmem [shape: f32[500,128], index: 0, kind: input, shape index: {}]
  %s1 = inlined_call_operand.vmem [shape: f32[128,256], index: 1, kind: input, shape index: {}]
  %s2 = inlined_call_operand.vmem [shape: f32[500,256], index: 2, kind: output, shape index: {}]
  %s3 = sld [smem:[#allocation0]]
  $region67: #{rand_proj_forward.1} parent=0
    _
  %s5 = ssub.s32 1, %s3
  %s6 = scalar_select 0, %s5, %s3
  $region1: #{rand_proj_forward.1} parent=0
    #allocation2 [shape = 'u8[262144]{0}', space=vmem, size = 0x40000, scoped, tag = 'output window, operand 0']
    loop: start=0, step=1, limit=6
    $region2: #{rand_proj_forward.1} parent=1 // loop_pre_header
      _
    $region3: #{rand_proj_forward.1} parent=1 // loop_header
      %s8 = sphi 0, %s12
      %p9 = scmp.ge.s32.totalorder %s8, 6
      %s18 = sphi 0, %s20
      %s21 = sphi 0, %s18
      %s22 = sphi 0, %s21
      %s38 = sphi 0, %s22
      %s42 = sphi 0, %s42
      %s44 = sphi 0, %s42
      %s45 = sphi 0, %s44
      %s59 = sphi 0, %s45
      %s65 = sphi 0, %s67
      %s68 = sphi 0, %s65
      %s69 = sphi 0, %s68
      %s85 = sphi 0, %s69
    $region4: #{rand_proj_forward.1} parent=1 // loop_header_branch
      %11 = sbr.rel (%p9) target = $region8
    $region5: #{rand_proj_forward.1} parent=1 // loop_body
      %s13 = ssub.s32 %s8, 1
      %s14 = ssub.s32 %s8, 2
      %s15 = sadd.s32 %s8, 1
      %s16 = ssub.s32 %s8, %s15
      %p17 = scmp.eq.s32.totalorder %s16, 0
      %s19 = sadd.s32 %s18, 1
      %s20 = scalar_select %p17, %s18, %s19
      %p23 = pneg %p17
      %p24 = scmp.eq.s32.totalorder %s8, 3
      %p25 = por %p23, %p24
      %p26 = scmp.ne.s32.totalorder %s18, %s21
      %p27 = scmp.eq.s32.totalorder %s8, 0
      %p28 = por %p26, %p27
      %p29 = scmp.ne.s32.totalorder %s18, %s21
      %p30 = scmp.eq.s32.totalorder %s13, 3
      %p31 = por %p29, %p30
      %p32 = scmp.ne.s32.totalorder %s21, %s22
      %p33 = scmp.eq.s32.totalorder %s13, 0
      %p34 = por %p32, %p33
      %p35 = scmp.ne.s32.totalorder %s21, %s22
      %p36 = scmp.eq.s32.totalorder %s14, 3
      %p37 = por %p35, %p36
      %p39 = scmp.ne.s32.totalorder %s22, %s38
      %p40 = scmp.eq.s32.totalorder %s14, 0
      %p41 = por %p39, %p40
      %s43 = sadd.s32 %s42, 1
      %p46 = scmp.eq.s32.totalorder %s8, 3
      %p47 = scmp.ne.s32.totalorder %s42, %s44
      %p48 = scmp.eq.s32.totalorder %s8, 0
      %p49 = por %p47, %p48
      %p50 = scmp.ne.s32.totalorder %s42, %s44
      %p51 = scmp.eq.s32.totalorder %s13, 3
      %p52 = por %p50, %p51
      %p53 = scmp.ne.s32.totalorder %s44, %s45
      %p54 = scmp.eq.s32.totalorder %s13, 0
      %p55 = por %p53, %p54
      %p56 = scmp.ne.s32.totalorder %s44, %s45
      %p57 = scmp.eq.s32.totalorder %s14, 3
      %p58 = por %p56, %p57
      %p60 = scmp.ne.s32.totalorder %s45, %s59
      %p61 = scmp.eq.s32.totalorder %s14, 0
      %p62 = por %p60, %p61
      %s63 = ssub.s32 %s8, %s15
      %p64 = scmp.eq.s32.totalorder %s63, 0
      %s66 = sadd.s32 %s65, 1
      %s67 = scalar_select %p64, %s65, %s66
      %p70 = pneg %p64
      %p71 = scmp.eq.s32.totalorder %s8, 3
      %p72 = por %p70, %p71
      %p73 = scmp.ne.s32.totalorder %s65, %s68
      %p74 = scmp.eq.s32.totalorder %s8, 0
      %p75 = por %p73, %p74
      %p76 = scmp.ne.s32.totalorder %s65, %s68
      %p77 = scmp.eq.s32.totalorder %s13, 3
      %p78 = por %p76, %p77
      %p79 = scmp.ne.s32.totalorder %s68, %s69
      %p80 = scmp.eq.s32.totalorder %s13, 0
      %p81 = por %p79, %p80
      %p82 = scmp.ne.s32.totalorder %s68, %s69
      %p83 = scmp.eq.s32.totalorder %s14, 3
      %p84 = por %p82, %p83
      %p86 = scmp.ne.s32.totalorder %s69, %s85
      %p87 = scmp.eq.s32.totalorder %s14, 0
      %p88 = por %p86, %p87
      %p89 = scmp.le.s32.totalorder 1, %s8
      %p90 = scmp.lt.s32.totalorder %s8, 5
      %p91 = pnand %p89, %p90
      %p92 = pneg %p91
      // Predicated region
      $region9: #{rand_proj_forward.1} parent=5 // pred_check
        _
      $region10: #{rand_proj_forward.1} parent=5 // pred_check_branch
        %94 = sbr.rel (%p91) target = $region12
      $region11: #{rand_proj_forward.1} parent=5 // pred_region
        %s95 = ssub.s32 %s8, 1
        // Predicated region
        $region13: #{rand_proj_forward.1} parent=11 // pred_check
          %p96 = pneg %p55
        $region14: #{rand_proj_forward.1} parent=11 // pred_check_branch
          %98 = sbr.rel (%p96) target = $region16
        $region15: #{rand_proj_forward.1} parent=11 // pred_region
          _
        $region16: #{rand_proj_forward.1} parent=11 // pred_fallthru
          _
      $region12: #{rand_proj_forward.1} parent=5 // pred_fallthru
        _
      %p99 = scmp.lt.s32.totalorder %s8, 4
      // Predicated region
      $region17: #{rand_proj_forward.1} parent=5 // pred_check
        %p100 = pneg %p99
      $region18: #{rand_proj_forward.1} parent=5 // pred_check_branch
        %102 = sbr.rel (%p100) target = $region20
      $region19: #{rand_proj_forward.1} parent=5 // pred_region
        // Predicated region
        $region21: #{rand_proj_forward.1} parent=19 // pred_check
          %p103 = pneg %p28
        $region22: #{rand_proj_forward.1} parent=19 // pred_check_branch
          %105 = sbr.rel (%p103) target = $region24
        $region23: #{rand_proj_forward.1} parent=19 // pred_region
          %s106 = smul.u32 16, %s8
          %s107 = ssub.s32 63, %s106
          %p108 = scmp.lt.s32.totalorder %s107, 16
          %s109 = scalar_select %p108, %s107, 16
          %s110 = smul.u32 8, %s109
          %p111 = scmp.lt.s32.totalorder %s106, 62
          %s112 = scalar_select %p111, %s106, 62
          %s113 = smul.addr %s112, 8
          %s114 = scalar_lea.vmem %s0, %s113
          %s115 = smul.u32 16, %s8
          %s116 = ssub.s32 63, %s115
          %p117 = scmp.lt.s32.totalorder %s116, 16
          %s118 = scalar_select %p117, %s116, 16
          %s119 = smul.u32 8, %s118
        $region24: #{rand_proj_forward.1} parent=19 // pred_fallthru
          _
      $region20: #{rand_proj_forward.1} parent=5 // pred_fallthru
        _
      %p120 = scmp.le.s32.totalorder 1, %s8
      %p121 = scmp.lt.s32.totalorder %s8, 5
      %p122 = pnand %p120, %p121
      %p123 = pneg %p122
      // Predicated region
      $region25: #{rand_proj_forward.1} parent=5 // pred_check
        _
      $region26: #{rand_proj_forward.1} parent=5 // pred_check_branch
        %125 = sbr.rel (%p122) target = $region28
      $region27: #{rand_proj_forward.1} parent=5 // pred_region
        %s126 = ssub.s32 %s8, 1
        %s127 = smul.u32 16, %s13
        %s128 = ssub.s32 63, %s127
        %p129 = scmp.lt.s32.totalorder %s128, 16
        %s130 = scalar_select %p129, %s128, 16
        %s131 = smul.u32 8, %s130
        %p132 = scmp.lt.s32.totalorder %s127, 62
        %s133 = scalar_select %p132, %s127, 62
        %s134 = smul.addr %s133, 8
        %s135 = scalar_lea.vmem %s0, %s134
        %p136 = pneg %p34
        %p137 = pneg %p31
        %p138 = pneg %p55
        %p139 = pneg %p52
        %p140 = pneg %p81
        %p141 = pneg %p78
        %s142 = sand.u32 %s68, 1
        %s143 = sand.u32 %s68, 1
        %s144 = smul.addr %s143, 256
        %s145 = scalar_lea.vmem [#allocation2], %s144
        %s146 = smul.u32 16, %s13
        %s147 = ssub.s32 63, %s146
        %p148 = scmp.lt.s32.totalorder %s147, 16
        %s149 = scalar_select %p148, %s147, 16
        %s150 = smul.u32 8, %s149
        %p151 = scmp.lt.s32.totalorder %s146, 62
        %s152 = scalar_select %p151, %s146, 62
        %s153 = smul.addr %s152, 8
        %s154 = scalar_lea.vmem %s0, %s153
        %s155 = smul.u32 16, %s13
        %s156 = ssub.s32 63, %s155
        %p157 = scmp.lt.s32.totalorder %s156, 16
        %s158 = scalar_select %p157, %s156, 16
        %s159 = smul.u32 8, %s158
        %s160 = smul.u32 16, %s13
        %s161 = ssub.s32 63, %s160
        %p162 = scmp.lt.s32.totalorder %s161, 16
        %s163 = scalar_select %p162, %s161, 16
        %s164 = smul.u32 8, %s163
        %s165 = smul.u32 %s164, 2
        %v166 = vld [vmem:[%s154] sm:$0xff]
        %v167 = vld [vmem:[%s154 + $0x8] sm:$0xff]
        %v168 = vld [vmem:[%s154 + $0x10] sm:$0xff]
        %v169 = vld [vmem:[%s154 + $0x18] sm:$0xff]
        %v170 = vld [vmem:[%s154 + $0x20] sm:$0xff]
        %v171 = vld [vmem:[%s154 + $0x28] sm:$0xff]
        %v172 = vld [vmem:[%s154 + $0x30] sm:$0xff]
        %v173 = vld [vmem:[%s154 + $0x38] sm:$0xff]
        %v174 = vld [vmem:[%s154 + $0x40] sm:$0xff]
        %v175 = vld [vmem:[%s154 + $0x48] sm:$0xff]
        %v176 = vld [vmem:[%s154 + $0x50] sm:$0xff]
        %v177 = vld [vmem:[%s154 + $0x58] sm:$0xff]
        %v178 = vld [vmem:[%s154 + $0x60] sm:$0xff]
        %v179 = vld [vmem:[%s154 + $0x68] sm:$0xff]
        %v180 = vld [vmem:[%s154 + $0x70] sm:$0xff]
        %v181 = vld [vmem:[%s154 + $0x78] sm:$0xff]
        %v182 = vld [vmem:[%s1] sm:$0xff]
        %v183 = vld [vmem:[%s1 + $0x8] sm:$0xff]
        %v184 = vld [vmem:[%s1 + $0x10] sm:$0xff]
        %v185 = vld [vmem:[%s1 + $0x18] sm:$0xff]
        %v186 = vld [vmem:[%s1 + $0x20] sm:$0xff]
        %v187 = vld [vmem:[%s1 + $0x28] sm:$0xff]
        %v188 = vld [vmem:[%s1 + $0x30] sm:$0xff]
        %v189 = vld [vmem:[%s1 + $0x38] sm:$0xff]
        %v190 = vld [vmem:[%s1 + $0x40] sm:$0xff]
        %v191 = vld [vmem:[%s1 + $0x48] sm:$0xff]
        %v192 = vld [vmem:[%s1 + $0x50] sm:$0xff]
        %v193 = vld [vmem:[%s1 + $0x58] sm:$0xff]
        %v194 = vld [vmem:[%s1 + $0x60] sm:$0xff]
        %v195 = vld [vmem:[%s1 + $0x68] sm:$0xff]
        %v196 = vld [vmem:[%s1 + $0x70] sm:$0xff]
        %v197 = vld [vmem:[%s1 + $0x78] sm:$0xff]
        %v198 = vld [vmem:[%s1 + $0x80] sm:$0xff]
        %v199 = vld [vmem:[%s1 + $0x88] sm:$0xff]
        %v200 = vld [vmem:[%s1 + $0x90] sm:$0xff]
        %v201 = vld [vmem:[%s1 + $0x98] sm:$0xff]
        %v202 = vld [vmem:[%s1 + $0xa0] sm:$0xff]
        %v203 = vld [vmem:[%s1 + $0xa8] sm:$0xff]
        %v204 = vld [vmem:[%s1 + $0xb0] sm:$0xff]
        %v205 = vld [vmem:[%s1 + $0xb8] sm:$0xff]
        %v206 = vld [vmem:[%s1 + $0xc0] sm:$0xff]
        %v207 = vld [vmem:[%s1 + $0xc8] sm:$0xff]
        %v208 = vld [vmem:[%s1 + $0xd0] sm:$0xff]
        %v209 = vld [vmem:[%s1 + $0xd8] sm:$0xff]
        %v210 = vld [vmem:[%s1 + $0xe0] sm:$0xff]
        %v211 = vld [vmem:[%s1 + $0xe8] sm:$0xff]
        %v212 = vld [vmem:[%s1 + $0xf0] sm:$0xff]
        %v213 = vld [vmem:[%s1 + $0xf8] sm:$0xff]
        %214 = vmatpush.msra.mxu0 %v212
        %215 = vmatpush.msra.mxu0 %v210
        %216 = vmatpush.msra.mxu0 %v208
        %217 = vmatpush.msra.mxu0 %v206
        %218 = vmatpush.msra.mxu0 %v204
        %219 = vmatpush.msra.mxu0 %v202
        %220 = vmatpush.msra.mxu0 %v200
        %221 = vmatpush.msra.mxu0 %v198
        %222 = vmatpush.msra.mxu0 %v196
        %223 = vmatpush.msra.mxu0 %v194
        %224 = vmatpush.msra.mxu0 %v192
        %225 = vmatpush.msra.mxu0 %v190
        %226 = vmatpush.msra.mxu0 %v188
        %227 = vmatpush.msra.mxu0 %v186
        %228 = vmatpush.msra.mxu0 %v184
        %229 = vmatpush.msra.mxu0 %v182
        %230 = vmatmul.f32.gmra.mxu0 %v166
        %v231 = vpop.f32.mrf.mxu0
        %v232 = vadd.f32 0.0, %v231
        %233 = vmatmul.f32.gmra.mxu0 %v167
        %v234 = vpop.f32.mrf.mxu0
        %v235 = vadd.f32 0.0, %v234
        %236 = vmatmul.f32.gmra.mxu0 %v168
        %v237 = vpop.f32.mrf.mxu0
        %v238 = vadd.f32 0.0, %v237
        %239 = vmatmul.f32.gmra.mxu0 %v169
        %v240 = vpop.f32.mrf.mxu0
        %v241 = vadd.f32 0.0, %v240
        %242 = vmatmul.f32.gmra.mxu0 %v170
        %v243 = vpop.f32.mrf.mxu0
        %v244 = vadd.f32 0.0, %v243
        %245 = vmatmul.f32.gmra.mxu0 %v171
        %v246 = vpop.f32.mrf.mxu0
        %v247 = vadd.f32 0.0, %v246
        %248 = vmatmul.f32.gmra.mxu0 %v172
        %v249 = vpop.f32.mrf.mxu0
        %v250 = vadd.f32 0.0, %v249
        %251 = vmatmul.f32.gmra.mxu0 %v173
        %v252 = vpop.f32.mrf.mxu0
        %v253 = vadd.f32 0.0, %v252
        %254 = vmatmul.f32.gmra.mxu0 %v174
        %v255 = vpop.f32.mrf.mxu0
        %v256 = vadd.f32 0.0, %v255
        %257 = vmatmul.f32.gmra.mxu0 %v175
        %v258 = vpop.f32.mrf.mxu0
        %v259 = vadd.f32 0.0, %v258
        %260 = vmatmul.f32.gmra.mxu0 %v176
        %v261 = vpop.f32.mrf.mxu0
        %v262 = vadd.f32 0.0, %v261
        %263 = vmatmul.f32.gmra.mxu0 %v177
        %v264 = vpop.f32.mrf.mxu0
        %v265 = vadd.f32 0.0, %v264
        %266 = vmatmul.f32.gmra.mxu0 %v178
        %v267 = vpop.f32.mrf.mxu0
        %v268 = vadd.f32 0.0, %v267
        %269 = vmatmul.f32.gmra.mxu0 %v179
        %v270 = vpop.f32.mrf.mxu0
        %v271 = vadd.f32 0.0, %v270
        %272 = vmatmul.f32.gmra.mxu0 %v180
        %v273 = vpop.f32.mrf.mxu0
        %v274 = vadd.f32 0.0, %v273
        %275 = vmatmul.f32.gmra.mxu0 %v181
        %v276 = vpop.f32.mrf.mxu0
        %v277 = vadd.f32 0.0, %v276
        %278 = vdwg.mxu0
        %279 = vmatpush.msra.mxu0 %v213
        %280 = vmatpush.msra.mxu0 %v211
        %281 = vmatpush.msra.mxu0 %v209
        %282 = vmatpush.msra.mxu0 %v207
        %283 = vmatpush.msra.mxu0 %v205
        %284 = vmatpush.msra.mxu0 %v203
        %285 = vmatpush.msra.mxu0 %v201
        %286 = vmatpush.msra.mxu0 %v199
        %287 = vmatpush.msra.mxu0 %v197
        %288 = vmatpush.msra.mxu0 %v195
        %289 = vmatpush.msra.mxu0 %v193
        %290 = vmatpush.msra.mxu0 %v191
        %291 = vmatpush.msra.mxu0 %v189
        %292 = vmatpush.msra.mxu0 %v187
        %293 = vmatpush.msra.mxu0 %v185
        %294 = vmatpush.msra.mxu0 %v183
        %295 = vmatmul.f32.gmra.mxu0 %v166
        %v296 = vpop.f32.mrf.mxu0
        %v297 = vadd.f32 0.0, %v296
        %298 = vmatmul.f32.gmra.mxu0 %v167
        %v299 = vpop.f32.mrf.mxu0
        %v300 = vadd.f32 0.0, %v299
        %301 = vmatmul.f32.gmra.mxu0 %v168
        %v302 = vpop.f32.mrf.mxu0
        %v303 = vadd.f32 0.0, %v302
        %304 = vmatmul.f32.gmra.mxu0 %v169
        %v305 = vpop.f32.mrf.mxu0
        %v306 = vadd.f32 0.0, %v305
        %307 = vmatmul.f32.gmra.mxu0 %v170
        %v308 = vpop.f32.mrf.mxu0
        %v309 = vadd.f32 0.0, %v308
        %310 = vmatmul.f32.gmra.mxu0 %v171
        %v311 = vpop.f32.mrf.mxu0
        %v312 = vadd.f32 0.0, %v311
        %313 = vmatmul.f32.gmra.mxu0 %v172
        %v314 = vpop.f32.mrf.mxu0
        %v315 = vadd.f32 0.0, %v314
        %316 = vmatmul.f32.gmra.mxu0 %v173
        %v317 = vpop.f32.mrf.mxu0
        %v318 = vadd.f32 0.0, %v317
        %319 = vmatmul.f32.gmra.mxu0 %v174
        %v320 = vpop.f32.mrf.mxu0
        %v321 = vadd.f32 0.0, %v320
        %322 = vmatmul.f32.gmra.mxu0 %v175
        %v323 = vpop.f32.mrf.mxu0
        %v324 = vadd.f32 0.0, %v323
        %325 = vmatmul.f32.gmra.mxu0 %v176
        %v326 = vpop.f32.mrf.mxu0
        %v327 = vadd.f32 0.0, %v326
        %328 = vmatmul.f32.gmra.mxu0 %v177
        %v329 = vpop.f32.mrf.mxu0
        %v330 = vadd.f32 0.0, %v329
        %331 = vmatmul.f32.gmra.mxu0 %v178
        %v332 = vpop.f32.mrf.mxu0
        %v333 = vadd.f32 0.0, %v332
        %334 = vmatmul.f32.gmra.mxu0 %v179
        %v335 = vpop.f32.mrf.mxu0
        %v336 = vadd.f32 0.0, %v335
        %337 = vmatmul.f32.gmra.mxu0 %v180
        %v338 = vpop.f32.mrf.mxu0
        %v339 = vadd.f32 0.0, %v338
        %340 = vmatmul.f32.gmra.mxu0 %v181
        %v341 = vpop.f32.mrf.mxu0
        %v342 = vadd.f32 0.0, %v341
        %343 = vdwg.mxu0
        %vm344 = vcmp.gt.f32.partialorder %v232, 0.0
        %vm345 = vcmp.gt.f32.partialorder %v297, 0.0
        %vm346 = vcmp.gt.f32.partialorder %v235, 0.0
        %vm347 = vcmp.gt.f32.partialorder %v300, 0.0
        %vm348 = vcmp.gt.f32.partialorder %v238, 0.0
        %vm349 = vcmp.gt.f32.partialorder %v303, 0.0
        %vm350 = vcmp.gt.f32.partialorder %v241, 0.0
        %vm351 = vcmp.gt.f32.partialorder %v306, 0.0
        %vm352 = vcmp.gt.f32.partialorder %v244, 0.0
        %vm353 = vcmp.gt.f32.partialorder %v309, 0.0
        %vm354 = vcmp.gt.f32.partialorder %v247, 0.0
        %vm355 = vcmp.gt.f32.partialorder %v312, 0.0
        %vm356 = vcmp.gt.f32.partialorder %v250, 0.0
        %vm357 = vcmp.gt.f32.partialorder %v315, 0.0
        %vm358 = vcmp.gt.f32.partialorder %v253, 0.0
        %vm359 = vcmp.gt.f32.partialorder %v318, 0.0
        %vm360 = vcmp.gt.f32.partialorder %v256, 0.0
        %vm361 = vcmp.gt.f32.partialorder %v321, 0.0
        %vm362 = vcmp.gt.f32.partialorder %v259, 0.0
        %vm363 = vcmp.gt.f32.partialorder %v324, 0.0
        %vm364 = vcmp.gt.f32.partialorder %v262, 0.0
        %vm365 = vcmp.gt.f32.partialorder %v327, 0.0
        %vm366 = vcmp.gt.f32.partialorder %v265, 0.0
        %vm367 = vcmp.gt.f32.partialorder %v330, 0.0
        %vm368 = vcmp.gt.f32.partialorder %v268, 0.0
        %vm369 = vcmp.gt.f32.partialorder %v333, 0.0
        %vm370 = vcmp.gt.f32.partialorder %v271, 0.0
        %vm371 = vcmp.gt.f32.partialorder %v336, 0.0
        %vm372 = vcmp.gt.f32.partialorder %v274, 0.0
        %vm373 = vcmp.gt.f32.partialorder %v339, 0.0
        %vm374 = vcmp.gt.f32.partialorder %v277, 0.0
        %vm375 = vcmp.gt.f32.partialorder %v342, 0.0
        %v376 = vsel %vm344, 1, 0
        %v377 = vsel %vm345, 1, 0
        %v378 = vsel %vm346, 1, 0
        %v379 = vsel %vm347, 1, 0
        %v380 = vsel %vm348, 1, 0
        %v381 = vsel %vm349, 1, 0
        %v382 = vsel %vm350, 1, 0
        %v383 = vsel %vm351, 1, 0
        %v384 = vsel %vm352, 1, 0
        %v385 = vsel %vm353, 1, 0
        %v386 = vsel %vm354, 1, 0
        %v387 = vsel %vm355, 1, 0
        %v388 = vsel %vm356, 1, 0
        %v389 = vsel %vm357, 1, 0
        %v390 = vsel %vm358, 1, 0
        %v391 = vsel %vm359, 1, 0
        %v392 = vsel %vm360, 1, 0
        %v393 = vsel %vm361, 1, 0
        %v394 = vsel %vm362, 1, 0
        %v395 = vsel %vm363, 1, 0
        %v396 = vsel %vm364, 1, 0
        %v397 = vsel %vm365, 1, 0
        %v398 = vsel %vm366, 1, 0
        %v399 = vsel %vm367, 1, 0
        %v400 = vsel %vm368, 1, 0
        %v401 = vsel %vm369, 1, 0
        %v402 = vsel %vm370, 1, 0
        %v403 = vsel %vm371, 1, 0
        %v404 = vsel %vm372, 1, 0
        %v405 = vsel %vm373, 1, 0
        %v406 = vsel %vm374, 1, 0
        %v407 = vsel %vm375, 1, 0
        %v408 = vcvt.s32.f32 %v376
        %v409 = vcvt.s32.f32 %v377
        %v410 = vcvt.s32.f32 %v378
        %v411 = vcvt.s32.f32 %v379
        %v412 = vcvt.s32.f32 %v380
        %v413 = vcvt.s32.f32 %v381
        %v414 = vcvt.s32.f32 %v382
        %v415 = vcvt.s32.f32 %v383
        %v416 = vcvt.s32.f32 %v384
        %v417 = vcvt.s32.f32 %v385
        %v418 = vcvt.s32.f32 %v386
        %v419 = vcvt.s32.f32 %v387
        %v420 = vcvt.s32.f32 %v388
        %v421 = vcvt.s32.f32 %v389
        %v422 = vcvt.s32.f32 %v390
        %v423 = vcvt.s32.f32 %v391
        %v424 = vcvt.s32.f32 %v392
        %v425 = vcvt.s32.f32 %v393
        %v426 = vcvt.s32.f32 %v394
        %v427 = vcvt.s32.f32 %v395
        %v428 = vcvt.s32.f32 %v396
        %v429 = vcvt.s32.f32 %v397
        %v430 = vcvt.s32.f32 %v398
        %v431 = vcvt.s32.f32 %v399
        %v432 = vcvt.s32.f32 %v400
        %v433 = vcvt.s32.f32 %v401
        %v434 = vcvt.s32.f32 %v402
        %v435 = vcvt.s32.f32 %v403
        %v436 = vcvt.s32.f32 %v404
        %v437 = vcvt.s32.f32 %v405
        %v438 = vcvt.s32.f32 %v406
        %v439 = vcvt.s32.f32 %v407
        %440 = vst [vmem:[%s145] sm:$0xff] %v408
        %441 = vst [vmem:[%s145 + $0x8] sm:$0xff] %v409
        %442 = vst [vmem:[%s145 + $0x10] sm:$0xff] %v410
        %443 = vst [vmem:[%s145 + $0x18] sm:$0xff] %v411
        %444 = vst [vmem:[%s145 + $0x20] sm:$0xff] %v412
        %445 = vst [vmem:[%s145 + $0x28] sm:$0xff] %v413
        %446 = vst [vmem:[%s145 + $0x30] sm:$0xff] %v414
        %447 = vst [vmem:[%s145 + $0x38] sm:$0xff] %v415
        %448 = vst [vmem:[%s145 + $0x40] sm:$0xff] %v416
        %449 = vst [vmem:[%s145 + $0x48] sm:$0xff] %v417
        %450 = vst [vmem:[%s145 + $0x50] sm:$0xff] %v418
        %451 = vst [vmem:[%s145 + $0x58] sm:$0xff] %v419
        %452 = vst [vmem:[%s145 + $0x60] sm:$0xff] %v420
        %453 = vst [vmem:[%s145 + $0x68] sm:$0xff] %v421
        %454 = vst [vmem:[%s145 + $0x70] sm:$0xff] %v422
        %455 = vst [vmem:[%s145 + $0x78] sm:$0xff] %v423
        %456 = vst [vmem:[%s145 + $0x80] sm:$0xff] %v424
        %457 = vst [vmem:[%s145 + $0x88] sm:$0xff] %v425
        %458 = vst [vmem:[%s145 + $0x90] sm:$0xff] %v426
        %459 = vst [vmem:[%s145 + $0x98] sm:$0xff] %v427
        %460 = vst [vmem:[%s145 + $0xa0] sm:$0xff] %v428
        %461 = vst [vmem:[%s145 + $0xa8] sm:$0xff] %v429
        %462 = vst [vmem:[%s145 + $0xb0] sm:$0xff] %v430
        %463 = vst [vmem:[%s145 + $0xb8] sm:$0xff] %v431
        %464 = vst [vmem:[%s145 + $0xc0] sm:$0xff] %v432
        %465 = vst [vmem:[%s145 + $0xc8] sm:$0xff] %v433
        %466 = vst [vmem:[%s145 + $0xd0] sm:$0xff] %v434
        %467 = vst [vmem:[%s145 + $0xd8] sm:$0xff] %v435
        %468 = vst [vmem:[%s145 + $0xe0] sm:$0xff] %v436
        %469 = vst [vmem:[%s145 + $0xe8] sm:$0xff] %v437
        %470 = vst [vmem:[%s145 + $0xf0] sm:$0xff] %v438
        %471 = vst [vmem:[%s145 + $0xf8] sm:$0xff] %v439
        %s472 = sand.u32 %s68, 1
        %s473 = sand.u32 %s68, 1
        %s474 = smul.addr %s473, 256
        %s475 = scalar_lea.vmem [#allocation2], %s474
        // Predicated region
        $region29: #{rand_proj_forward.1} parent=27 // pred_check
          %p476 = pneg %p78
        $region30: #{rand_proj_forward.1} parent=27 // pred_check_branch
          %478 = sbr.rel (%p476) target = $region32
        $region31: #{rand_proj_forward.1} parent=27 // pred_region
          %s479 = smul.u32 16, %s13
          %s480 = ssub.s32 63, %s479
          %p481 = scmp.lt.s32.totalorder %s480, 16
          %s482 = scalar_select %p481, %s480, 16
          %s483 = smul.u32 8, %s482
          %s484 = smul.u32 %s483, 2
          %p485 = scmp.ne.s32.totalorder 0, %s484
          %s486 = smul.addr %s479, 2
          %s487 = smul.addr %s486, 8
          %s488 = scalar_lea.vmem %s2, %s487
          // Predicated region
          $region33: #{rand_proj_forward.1} parent=31 // pred_check
            %p489 = pneg %p485
          $region34: #{rand_proj_forward.1} parent=31 // pred_check_branch
            %491 = sbr.rel (%p489) target = $region36
          $region35: #{rand_proj_forward.1} parent=31 // pred_region
            // Predicated region
            $region37: #{rand_proj_forward.1} parent=35 // pred_check
              _
            $region38: #{rand_proj_forward.1} parent=35 // pred_check_branch
              %493 = sbr.rel (0) target = $region40
            $region39: #{rand_proj_forward.1} parent=35 // pred_region
              %s494 = sshrl.u32 %s482, 4
              // While loop
              $region41: #{rand_proj_forward.1} parent=39 // loop_pre_header
                _
              $region42: #{rand_proj_forward.1} parent=39 // loop_header
                %s496 = sphi 0, %s498
                %p497 = scmp.ge.s32.totalorder %s496, %s494
                %s501 = sphi 0, %s570
                %s502 = sphi %s475, %s573
                %s503 = sphi %s488, %s574
              $region43: #{rand_proj_forward.1} parent=39 // loop_header_branch
                %500 = sbr.rel (%p497) target = $region47
              $region44: #{rand_proj_forward.1} parent=39 // loop_body
                %v504 = vld [vmem:[%s502] sm:$0xff]
                %505 = vst [vmem:[%s503] sm:$0xff] %v504
                %v506 = vld [vmem:[%s502 + $0x10] sm:$0xff]
                %507 = vst [vmem:[%s503 + $0x10] sm:$0xff] %v506
                %v508 = vld [vmem:[%s502 + $0x20] sm:$0xff]
                %509 = vst [vmem:[%s503 + $0x20] sm:$0xff] %v508
                %v510 = vld [vmem:[%s502 + $0x30] sm:$0xff]
                %511 = vst [vmem:[%s503 + $0x30] sm:$0xff] %v510
                %v512 = vld [vmem:[%s502 + $0x40] sm:$0xff]
                %513 = vst [vmem:[%s503 + $0x40] sm:$0xff] %v512
                %v514 = vld [vmem:[%s502 + $0x50] sm:$0xff]
                %515 = vst [vmem:[%s503 + $0x50] sm:$0xff] %v514
                %v516 = vld [vmem:[%s502 + $0x60] sm:$0xff]
                %517 = vst [vmem:[%s503 + $0x60] sm:$0xff] %v516
                %v518 = vld [vmem:[%s502 + $0x70] sm:$0xff]
                %519 = vst [vmem:[%s503 + $0x70] sm:$0xff] %v518
                %v520 = vld [vmem:[%s502 + $0x80] sm:$0xff]
                %521 = vst [vmem:[%s503 + $0x80] sm:$0xff] %v520
                %v522 = vld [vmem:[%s502 + $0x90] sm:$0xff]
                %523 = vst [vmem:[%s503 + $0x90] sm:$0xff] %v522
                %v524 = vld [vmem:[%s502 + $0xa0] sm:$0xff]
                %525 = vst [vmem:[%s503 + $0xa0] sm:$0xff] %v524
                %v526 = vld [vmem:[%s502 + $0xb0] sm:$0xff]
                %527 = vst [vmem:[%s503 + $0xb0] sm:$0xff] %v526
                %v528 = vld [vmem:[%s502 + $0xc0] sm:$0xff]
                %529 = vst [vmem:[%s503 + $0xc0] sm:$0xff] %v528
                %v530 = vld [vmem:[%s502 + $0xd0] sm:$0xff]
                %531 = vst [vmem:[%s503 + $0xd0] sm:$0xff] %v530
                %v532 = vld [vmem:[%s502 + $0xe0] sm:$0xff]
                %533 = vst [vmem:[%s503 + $0xe0] sm:$0xff] %v532
                %v534 = vld [vmem:[%s502 + $0xf0] sm:$0xff]
                %535 = vst [vmem:[%s503 + $0xf0] sm:$0xff] %v534
                %v536 = vld [vmem:[%s502 + $0x8] sm:$0xff]
                %537 = vst [vmem:[%s503 + $0x8] sm:$0xff] %v536
                %v538 = vld [vmem:[%s502 + $0x18] sm:$0xff]
                %539 = vst [vmem:[%s503 + $0x18] sm:$0xff] %v538
                %v540 = vld [vmem:[%s502 + $0x28] sm:$0xff]
                %541 = vst [vmem:[%s503 + $0x28] sm:$0xff] %v540
                %v542 = vld [vmem:[%s502 + $0x38] sm:$0xff]
                %543 = vst [vmem:[%s503 + $0x38] sm:$0xff] %v542
                %v544 = vld [vmem:[%s502 + $0x48] sm:$0xff]
                %545 = vst [vmem:[%s503 + $0x48] sm:$0xff] %v544
                %v546 = vld [vmem:[%s502 + $0x58] sm:$0xff]
                %547 = vst [vmem:[%s503 + $0x58] sm:$0xff] %v546
                %v548 = vld [vmem:[%s502 + $0x68] sm:$0xff]
                %549 = vst [vmem:[%s503 + $0x68] sm:$0xff] %v548
                %v550 = vld [vmem:[%s502 + $0x78] sm:$0xff]
                %551 = vst [vmem:[%s503 + $0x78] sm:$0xff] %v550
                %v552 = vld [vmem:[%s502 + $0x88] sm:$0xff]
                %553 = vst [vmem:[%s503 + $0x88] sm:$0xff] %v552
                %v554 = vld [vmem:[%s502 + $0x98] sm:$0xff]
                %555 = vst [vmem:[%s503 + $0x98] sm:$0xff] %v554
                %v556 = vld [vmem:[%s502 + $0xa8] sm:$0xff]
                %557 = vst [vmem:[%s503 + $0xa8] sm:$0xff] %v556
                %v558 = vld [vmem:[%s502 + $0xb8] sm:$0xff]
                %559 = vst [vmem:[%s503 + $0xb8] sm:$0xff] %v558
                %v560 = vld [vmem:[%s502 + $0xc8] sm:$0xff]
                %561 = vst [vmem:[%s503 + $0xc8] sm:$0xff] %v560
                %v562 = vld [vmem:[%s502 + $0xd8] sm:$0xff]
                %563 = vst [vmem:[%s503 + $0xd8] sm:$0xff] %v562
                %v564 = vld [vmem:[%s502 + $0xe8] sm:$0xff]
                %565 = vst [vmem:[%s503 + $0xe8] sm:$0xff] %v564
                %v566 = vld [vmem:[%s502 + $0xf8] sm:$0xff]
                %567 = vst [vmem:[%s503 + $0xf8] sm:$0xff] %v566
                %s568 = sadd.s32 1, %s501
                %p569 = scmp.ge.s32.totalorder %s568, %s494
                %s570 = scalar_select %p569, 0, %s568
                %s571 = smul.u32 %s570, 256
                %s572 = smul.u32 %s570, 256
                %s573 = scalar_lea.vmem %s475, %s571 [#allocation2]
                %s574 = scalar_lea.vmem %s488, %s572
              $region45: #{rand_proj_forward.1} parent=39 // loop_footer
                %s498 = sadd.s32 %s496, 1
              $region46: #{rand_proj_forward.1} parent=39 // loop_footer_branch
                %495 = sbr.rel target = $region42
              $region47: #{rand_proj_forward.1} parent=39 // loop_exit
                _
              %s575 = sshrl.u32 %s482, 4
              %s576 = sand.u32 %s482, 15
              %s577 = smul.u32 %s575, 16
              %s578 = smul.u32 16, %s577
              %s579 = scalar_lea.vmem %s475, %s578 [#allocation2]
              %s580 = smul.u32 16, %s577
              %s581 = scalar_lea.vmem %s488, %s580
              // While loop
              $region48: #{rand_proj_forward.1} parent=39 // loop_pre_header
                _
              $region49: #{rand_proj_forward.1} parent=39 // loop_header
                %s583 = sphi 0, %s585
                %p584 = scmp.ge.s32.totalorder %s583, %s576
                %s588 = sphi 0, %s597
                %s589 = sphi %s579, %s600
                %s590 = sphi %s581, %s601
              $region50: #{rand_proj_forward.1} parent=39 // loop_header_branch
                %587 = sbr.rel (%p584) target = $region54
              $region51: #{rand_proj_forward.1} parent=39 // loop_body
                %v591 = vld [vmem:[%s589] sm:$0xff]
                %592 = vst [vmem:[%s590] sm:$0xff] %v591
                %v593 = vld [vmem:[%s589 + $0x8] sm:$0xff]
                %594 = vst [vmem:[%s590 + $0x8] sm:$0xff] %v593
                %s595 = sadd.s32 1, %s588
                %p596 = scmp.ge.s32.totalorder %s595, %s576
                %s597 = scalar_select %p596, 0, %s595
                %s598 = smul.u32 %s597, 16
                %s599 = smul.u32 %s597, 16
                %s600 = scalar_lea.vmem %s579, %s598 [#allocation2]
                %s601 = scalar_lea.vmem %s581, %s599
              $region52: #{rand_proj_forward.1} parent=39 // loop_footer
                %s585 = sadd.s32 %s583, 1
              $region53: #{rand_proj_forward.1} parent=39 // loop_footer_branch
                %582 = sbr.rel target = $region49
              $region54: #{rand_proj_forward.1} parent=39 // loop_exit
                _
            $region40: #{rand_proj_forward.1} parent=35 // pred_fallthru
              _
            // Predicated region
            $region55: #{rand_proj_forward.1} parent=35 // pred_check
              _
            $region56: #{rand_proj_forward.1} parent=35 // pred_check_branch
              %603 = sbr.rel target = $region58
            $region57: #{rand_proj_forward.1} parent=35 // pred_region
              _
            $region58: #{rand_proj_forward.1} parent=35 // pred_fallthru
              _
          $region36: #{rand_proj_forward.1} parent=31 // pred_fallthru
            _
          %604 = vnop
        $region32: #{rand_proj_forward.1} parent=27 // pred_fallthru
          _
      $region28: #{rand_proj_forward.1} parent=5 // pred_fallthru
        _
      %p605 = scmp.le.s32.totalorder 2, %s8
      // Predicated region
      $region59: #{rand_proj_forward.1} parent=5 // pred_check
        %p606 = pneg %p605
      $region60: #{rand_proj_forward.1} parent=5 // pred_check_branch
        %608 = sbr.rel (%p606) target = $region62
      $region61: #{rand_proj_forward.1} parent=5 // pred_region
        %s609 = ssub.s32 %s8, 2
        // Predicated region
        $region63: #{rand_proj_forward.1} parent=61 // pred_check
          %p610 = pneg %p84
        $region64: #{rand_proj_forward.1} parent=61 // pred_check_branch
          %612 = sbr.rel (%p610) target = $region66
        $region65: #{rand_proj_forward.1} parent=61 // pred_region
          %s613 = sand.u32 %s69, 1
          %s614 = sand.u32 %s69, 1
          %s615 = smul.addr %s614, 256
          %s616 = scalar_lea.vmem [#allocation2], %s615
        $region66: #{rand_proj_forward.1} parent=61 // pred_fallthru
          _
      $region62: #{rand_proj_forward.1} parent=5 // pred_fallthru
        _
    $region6: #{rand_proj_forward.1} parent=1 // loop_footer
      %s12 = sadd.s32 1, %s8
    $region7: #{rand_proj_forward.1} parent=1 // loop_footer_branch
      %7 = sbr.rel target = $region3
    $region8: #{rand_proj_forward.1} parent=1 // loop_exit
      _

</llo_original>
